<compile_context>
chip_gen: v7x
topology: tpu7x:2x2x1
jax: 0.10.0
libtpu: 0.0.40
codegen_flags: <defaults>
</compile_context>

<pallas_src>
import functools

import jax
import jax.numpy as jnp
from jax.experimental import pallas as pl
from jax.experimental.pallas import tpu as pltpu


def _smoothing_ce_kernel(logits_ref, labels_ref, out_ref, acc_ref, *,
                         epsilon, n_total, tile_n, tiles_per_core, need_mask):
    # logits_ref: (tile_n, C) native dtype, labels_ref: (tile_n, 1) int32
    # out_ref:    (8, 128) f32 per-core partial-sum block
    # acc_ref:    (tile_n, 1) f32 VMEM per-core running per-row loss accumulator
    t = pl.program_id(1)   # inner, "arbitrary" (reduction) axis

    @pl.when(t == 0)
    def _init():
        acc_ref[...] = jnp.zeros_like(acc_ref)

    x = logits_ref[...].astype(jnp.float32)        # cast on VPU (stream bf16 from HBM)
    labels = labels_ref[...]                       # (tile_n, 1) int32
    tn, c = x.shape

    # Pass 1 (single full-width sweep over x): row max, row sum, target gather.
    m = jnp.max(x, axis=-1, keepdims=True)                                   # (tn,1)
    sum_x = jnp.sum(x, axis=-1, keepdims=True)                               # (tn,1)
    col = jax.lax.broadcasted_iota(jnp.int32, (tn, c), 1)
    x_t = jnp.sum(jnp.where(col == labels, x, 0.0), axis=-1, keepdims=True)  # (tn,1)

    # Pass 2: numerically stable log-sum-exp (EUP exp, VPU/XLU reduce).
    lse = m + jnp.log(jnp.sum(jnp.exp(x - m), axis=-1, keepdims=True))       # (tn,1)

    # Smoothed-label CE, fully factored. Guard C == 1 (PyTorch ref would div-by-0).
    eps_uni = (epsilon / (c - 1)) if c > 1 else 0.0
    a = 1.0 - epsilon - eps_uni
    lse_coef = a + eps_uni * c                     # == 1.0 exactly for C > 1
    losses = lse_coef * lse - a * x_t - eps_uni * sum_x                      # (tn,1)

    # Mask padded rows (partial last tile and padded/duplicated grid steps)
    # BEFORE accumulation so garbage rows can never leak NaN/Inf into the sum.
    if need_mask:
        tile_idx = pl.program_id(0) * tiles_per_core + t
        row = jax.lax.broadcasted_iota(jnp.int32, (tn, 1), 0) + tile_idx * tile_n
        losses = jnp.where(row < n_total, losses, 0.0)

    acc_ref[...] += losses                         # pure VPU add, no per-step reduce

    @pl.when(t == pl.num_programs(1) - 1)
    def _finalize():
        total = jnp.sum(acc_ref[...])              # one cross-lane reduce per core
        out_ref[...] = jnp.zeros((8, 128), jnp.float32) + total


def _device_kind():
    try:
        return jax.devices()[0].device_kind.lower()
    except Exception:
        return ""


def _hw_config():
    """(tensorcores per device, vmem_limit_bytes, per-call working-set budget)."""
    kind = _device_kind()
    is_v7 = ("v7" in kind) or ("7x" in kind)
    is_dual_core = is_v7 or ("v4" in kind) or ("v5p" in kind) or (
        "v5" in kind and "lite" not in kind and "v5e" not in kind)
    if is_v7:
        # v7x: only 64 MiB physical VMEM per TC -> tighter tile / limit.
        return 2, 48 * 1024 * 1024, 28 * 1024 * 1024
    # v5e / v6e (and megacore v4/v5p): 128 MiB physical VMEM.
    return (2 if is_dual_core else 1), 64 * 1024 * 1024, 40 * 1024 * 1024


def _pick_tile_n(n, c, itemsize, n_cores, work_budget_bytes):
    """Rows per tile: multi-MiB input blocks to amortize the ~0.35 us/step overhead,
    sized so double-buffered inputs + f32 full-width temps + lane-padded per-row
    columns stay inside the VMEM working-set budget."""
    per_row = 2 * c * itemsize + 3 * c * 4 + 6 * 128 * 4
    t = work_budget_bytes // per_row
    t = max(8, (min(t, 4096) // 8) * 8)            # multiple of 8 sublanes, capped
    per_core = ((-(-n // n_cores)) + 7) // 8 * 8   # give every core some tiles
    t = min(t, max(8, per_core))
    if t >= n:
        t = n
    return int(t)


def smoothing_label_cross_entropy(logits, labels, epsilon=0.1, reduction="mean",
                                  tile_n=None):
    """Pallas TPU implementation of SmoothingLabelCrossEntropyLoss.forward.

    logits: (N, C) float array (f32 or bf16 — streamed in its native dtype)
    labels: (N,) int array of class indices
    Returns a scalar ('mean' or 'sum').
    Note: out-of-range labels silently contribute only the uniform-smoothing term.
    """
    if reduction not in ("mean", "sum"):
        # TODO(synk): reduction='none' (per-row loss vector output) not emitted by the kernel.
        raise NotImplementedError("kernel emits scalar reductions only (mean/sum)")

    n, c = logits.shape
    labels2d = labels.astype(jnp.int32).reshape(n, 1)
    itemsize = jnp.dtype(logits.dtype).itemsize

    n_cores, vmem_limit, work_budget = _hw_config()

    if tile_n is None:
        tile_n = _pick_tile_n(n, c, itemsize, n_cores, work_budget)
    else:
        tile_n = min(int(tile_n), n)
        if tile_n < n:
            assert tile_n % 8 == 0, "tile_n must be a multiple of 8 when tiling N"
    # TODO(synk): very large C (64K+ vocab) would need an inner C-chunk online-softmax
    # loop; this kernel assumes a full (tile_n, C) row block fits the VMEM budget.

    num_tiles = pl.cdiv(n, tile_n)
    n_cores = min(n_cores, num_tiles)
    tiles_per_core = pl.cdiv(num_tiles, n_cores)
    padded_steps = (n_cores * tiles_per_core) != num_tiles
    need_mask = (n % tile_n != 0) or padded_steps

    def _in_index(p, t):
        # Clamp so padded grid steps re-read the last tile (their rows are masked).
        idx = jnp.minimum(p * tiles_per_core + t, num_tiles - 1)
        return (idx, 0)

    kernel = functools.partial(
        _smoothing_ce_kernel,
        epsilon=float(epsilon), n_total=n, tile_n=tile_n,
        tiles_per_core=tiles_per_core, need_mask=need_mask,
    )

    cost = pl.CostEstimate(
        flops=6 * n * c,
        transcendentals=n * c,
        bytes_accessed=n * c * itemsize + n * 4 + n_cores * 8 * 128 * 4,
    )

    out = pl.pallas_call(
        kernel,
        out_shape=jax.ShapeDtypeStruct((8 * n_cores, 128), jnp.float32),
        grid=(n_cores, tiles_per_core),
        in_specs=[
            pl.BlockSpec((tile_n, c), _in_index),    # logits, native dtype (bf16 streams)
            pl.BlockSpec((tile_n, 1), _in_index),    # labels
        ],
        out_specs=pl.BlockSpec((8, 128), lambda p, t: (p, 0)),   # per-core partial
        scratch_shapes=[pltpu.VMEM((tile_n, 1), jnp.float32)],   # per-core row accumulator
        compiler_params=pltpu.CompilerParams(
            dimension_semantics=("parallel", "arbitrary"),
            vmem_limit_bytes=vmem_limit,
        ),
        cost_estimate=cost,
    )(logits, labels2d)

    total = jnp.sum(out[0::8, 0])          # cross-core add in the wrapper
    if reduction == "mean":
        total = total / jnp.float32(n)     # divide by full N exactly once
    return total


class SmoothingLabelCrossEntropyLoss:
    """Mirrors the PyTorch module: __init__(epsilon=0.1, reduction='mean')."""

    def __init__(self, epsilon=0.1, reduction="mean"):
        self._epsilon = epsilon
        self._reduction = reduction

    def __call__(self, logits, labels):
        return smoothing_label_cross_entropy(
            logits, labels, self._epsilon, self._reduction
        )


def _reference(logits, labels, epsilon=0.1, reduction="mean"):
    # Pure-JAX reference of the PyTorch forward.
    n, c = logits.shape
    smoothed = jnp.full((n, c), epsilon / (c - 1), dtype=jnp.float32)
    smoothed = smoothed.at[jnp.arange(n), labels].set(1.0 - epsilon)
    log_p = jax.nn.log_softmax(logits.astype(jnp.float32), axis=1)
    losses = -jnp.sum(log_p * smoothed, axis=1)
    if reduction == "mean":
        return jnp.sum(losses) / n
    return jnp.sum(losses)


if __name__ == "__main__":
    key = jax.random.PRNGKey(0)
    k_logits, k_labels = jax.random.split(key)

    # N deliberately not a multiple of the tile to exercise edge-row masking
    # and padded grid steps on dual-core chips.
    N, C = 52, 256
    TILE_N = 16
    logits = jax.random.normal(k_logits, (N, C), dtype=jnp.float32)
    labels = jax.random.randint(k_labels, (N,), 0, C, dtype=jnp.int32)

    ref = _reference(logits, labels, epsilon=0.1, reduction="mean")

    # 1) module-style call (auto tile size, hardware-aware)
    loss_fn = SmoothingLabelCrossEntropyLoss(epsilon=0.1, reduction="mean")
    loss = loss_fn(logits, labels)
    jax.block_until_ready(loss)
    assert jnp.allclose(loss, ref, atol=1e-4, rtol=1e-5), (loss, ref)

    # 2) explicitly tiled path (multiple tiles, last tile partial), mean + sum
    loss_t = smoothing_label_cross_entropy(logits, labels, 0.1, "mean", tile_n=TILE_N)
    jax.block_until_ready(loss_t)
    assert jnp.allclose(loss_t, ref, atol=1e-4, rtol=1e-5), (loss_t, ref)

    loss_s = smoothing_label_cross_entropy(logits, labels, 0.1, "sum", tile_n=TILE_N)
    ref_s = _reference(logits, labels, epsilon=0.1, reduction="sum")
    jax.block_until_ready(loss_s)
    assert jnp.allclose(loss_s, ref_s, atol=1e-3, rtol=1e-5), (loss_s, ref_s)

    # 3) bf16 streaming path: logits kept in bf16 through the BlockSpec, f32 math inside.
    logits_bf16 = logits.astype(jnp.bfloat16)
    loss_b = smoothing_label_cross_entropy(logits_bf16, labels, 0.1, "mean", tile_n=TILE_N)
    ref_b = _reference(logits_bf16.astype(jnp.float32), labels, epsilon=0.1, reduction="mean")
    jax.block_until_ready(loss_b)
    assert jnp.allclose(loss_b, ref_b, atol=1e-3, rtol=1e-3), (loss_b, ref_b)

    print("KERNEL_OK")
</pallas_src>

<mosaic_0001>
module attributes {stable_mosaic.version = 11 : i64} {
  func.func @_smoothing_ce_kernel(%arg0: i32, %arg1: i32, %arg2: memref<52x256xf32, #tpu.memory_space<vmem>>, %arg3: memref<52x1xi32, #tpu.memory_space<vmem>>, %arg4: memref<8x128xf32, #tpu.memory_space<vmem>>, %arg5: memref<52x1xf32, #tpu.memory_space<vmem>>) attributes {dimension_semantics = [#tpu.dimension_semantics<parallel>, #tpu.dimension_semantics<arbitrary>], iteration_bounds = array<i64: 1, 1>, scalar_prefetch = 0 : i64, scratch_operands = 1 : i64, tpu.core_type = #tpu.core_type<tc>, window_params = [{transform_indices = @transform_0, window_bounds = array<i64: 52, 256>}, {transform_indices = @transform_1, window_bounds = array<i64: 52, 1>}, {transform_indices = @transform_2, window_bounds = array<i64: 8, 128>}]} {
    %c0_i32 = arith.constant 0 : i32
    %0 = arith.cmpi eq, %arg1, %c0_i32 : i32
    %1 = arith.extui %0 : i1 to i32
    %c0_i32_0 = arith.constant 0 : i32
    %2 = arith.cmpi ne, %1, %c0_i32_0 : i32
    scf.if %2 {
      %cst_17 = arith.constant 0.000000e+00 : f32
      %37 = vector.broadcast %cst_17 : f32 to vector<52x1xf32>
      %c0_18 = arith.constant 0 : index
      %c0_19 = arith.constant 0 : index
      %38 = vector.load %arg5[%c0_18, %c0_19] : memref<52x1xf32, #tpu.memory_space<vmem>>, vector<52x1xf32>
      tpu.vector_store %arg5[%c0_18, %c0_19], %37 {strides = array<i32>} : memref<52x1xf32, #tpu.memory_space<vmem>>, vector<52x1xf32>,
    } else {
    }
    %c0 = arith.constant 0 : index
    %c0_1 = arith.constant 0 : index
    %3 = vector.load %arg2[%c0, %c0_1] : memref<52x256xf32, #tpu.memory_space<vmem>>, vector<52x256xf32>
    %c0_2 = arith.constant 0 : index
    %c0_3 = arith.constant 0 : index
    %4 = vector.load %arg3[%c0_2, %c0_3] : memref<52x1xi32, #tpu.memory_space<vmem>>, vector<52x1xi32>
    %cst = arith.constant dense<0xFF800000> : vector<52xf32>
    %5 = vector.multi_reduction <maximumf>, %3, %cst [1] : vector<52x256xf32> to vector<52xf32>
    %6 = vector.shape_cast %5 : vector<52xf32> to vector<52x1xf32>
    %cst_4 = arith.constant dense<0.000000e+00> : vector<52xf32>
    %7 = vector.multi_reduction <add>, %3, %cst_4 [1] : vector<52x256xf32> to vector<52xf32>
    %8 = vector.shape_cast %7 : vector<52xf32> to vector<52x1xf32>
    %9 = tpu.iota {dimensions = array<i32: 1>} : vector<52x256xi32>
    %10 = vector.broadcast %4 : vector<52x1xi32> to vector<52x256xi32>
    %11 = arith.cmpi eq, %9, %10 : vector<52x256xi32>
    %cst_5 = arith.constant 0.000000e+00 : f32
    %12 = vector.broadcast %cst_5 : f32 to vector<52x256xf32>
    %13 = arith.select %11, %3, %12 : vector<52x256xi1>, vector<52x256xf32>
    %cst_6 = arith.constant dense<0.000000e+00> : vector<52xf32>
    %14 = vector.multi_reduction <add>, %13, %cst_6 [1] : vector<52x256xf32> to vector<52xf32>
    %15 = vector.shape_cast %14 : vector<52xf32> to vector<52x1xf32>
    %16 = vector.broadcast %6 : vector<52x1xf32> to vector<52x256xf32>
    %17 = arith.subf %3, %16 : vector<52x256xf32>
    %18 = math.exp %17 : vector<52x256xf32>
    %cst_7 = arith.constant dense<0.000000e+00> : vector<52xf32>
    %19 = vector.multi_reduction <add>, %18, %cst_7 [1] : vector<52x256xf32> to vector<52xf32>
    %20 = vector.shape_cast %19 : vector<52xf32> to vector<52x1xf32>
    %21 = math.log %20 : vector<52x1xf32>
    %22 = arith.addf %6, %21 : vector<52x1xf32>
    %cst_8 = arith.constant 1.000000e+00 : f32
    %23 = vector.broadcast %cst_8 : f32 to vector<52x1xf32>
    %24 = arith.mulf %23, %22 : vector<52x1xf32>
    %cst_9 = arith.constant 0.899607837 : f32
    %25 = vector.broadcast %cst_9 : f32 to vector<52x1xf32>
    %26 = arith.mulf %25, %15 : vector<52x1xf32>
    %27 = arith.subf %24, %26 : vector<52x1xf32>
    %cst_10 = arith.constant 3.92156857E-4 : f32
    %28 = vector.broadcast %cst_10 : f32 to vector<52x1xf32>
    %29 = arith.mulf %28, %8 : vector<52x1xf32>
    %30 = arith.subf %27, %29 : vector<52x1xf32>
    %c0_11 = arith.constant 0 : index
    %c0_12 = arith.constant 0 : index
    %31 = vector.load %arg5[%c0_11, %c0_12] : memref<52x1xf32, #tpu.memory_space<vmem>>, vector<52x1xf32>
    %32 = arith.addf %31, %30 : vector<52x1xf32>
    %c0_13 = arith.constant 0 : index
    %c0_14 = arith.constant 0 : index
    %33 = vector.load %arg5[%c0_13, %c0_14] : memref<52x1xf32, #tpu.memory_space<vmem>>, vector<52x1xf32>
    tpu.vector_store %arg5[%c0_13, %c0_14], %32 {strides = array<i32>} : memref<52x1xf32, #tpu.memory_space<vmem>>, vector<52x1xf32>,
    %c0_i32_15 = arith.constant 0 : i32
    %34 = arith.cmpi eq, %arg1, %c0_i32_15 : i32
    %35 = arith.extui %34 : i1 to i32
    %c0_i32_16 = arith.constant 0 : i32
    %36 = arith.cmpi ne, %35, %c0_i32_16 : i32
    scf.if %36 {
      %c0_17 = arith.constant 0 : index
      %c0_18 = arith.constant 0 : index
      %37 = vector.load %arg5[%c0_17, %c0_18] : memref<52x1xf32, #tpu.memory_space<vmem>>, vector<52x1xf32>
      %38 = vector.shape_cast %37 : vector<52x1xf32> to vector<1x52x1xf32>
      %cst_19 = arith.constant dense<0.000000e+00> : vector<1xf32>
      %39 = vector.multi_reduction <add>, %38, %cst_19 [1, 2] : vector<1x52x1xf32> to vector<1xf32>
      %40 = vector.shape_cast %39 : vector<1xf32> to vector<1x1x1xf32>
      %41 = vector.extract %40[0, 0, 0] : f32 from vector<1x1x1xf32>
      %cst_20 = arith.constant 0.000000e+00 : f32
      %42 = vector.broadcast %cst_20 : f32 to vector<8x128xf32>
      %43 = vector.broadcast %41 : f32 to vector<8x128xf32>
      %44 = arith.addf %42, %43 : vector<8x128xf32>
      %c0_21 = arith.constant 0 : index
      %c0_22 = arith.constant 0 : index
      %45 = vector.load %arg4[%c0_21, %c0_22] : memref<8x128xf32, #tpu.memory_space<vmem>>, vector<8x128xf32>
      tpu.vector_store %arg4[%c0_21, %c0_22], %44 {strides = array<i32>} : memref<8x128xf32, #tpu.memory_space<vmem>>, vector<8x128xf32>,
    } else {
    }
    return
  }
  func.func @transform_0(%arg0: i32, %arg1: i32) -> (i32, i32) {
    %c1_i32 = arith.constant 1 : i32
    %0 = arith.muli %arg0, %c1_i32 : i32
    %1 = arith.addi %0, %arg1 : i32
    %c0_i32 = arith.constant 0 : i32
    %2 = arith.minsi %1, %c0_i32 : i32
    %c0_i32_0 = arith.constant 0 : i32
    %c0_i32_1 = arith.constant 0 : i32
    return %2, %c0_i32_0 : i32, i32
  }
  func.func @transform_1(%arg0: i32, %arg1: i32) -> (i32, i32) {
    %c1_i32 = arith.constant 1 : i32
    %0 = arith.muli %arg0, %c1_i32 : i32
    %1 = arith.addi %0, %arg1 : i32
    %c0_i32 = arith.constant 0 : i32
    %2 = arith.minsi %1, %c0_i32 : i32
    %c0_i32_0 = arith.constant 0 : i32
    %c0_i32_1 = arith.constant 0 : i32
    return %2, %c0_i32_0 : i32, i32
  }
  func.func @transform_2(%arg0: i32, %arg1: i32) -> (i32, i32) {
    %c0_i32 = arith.constant 0 : i32
    %c0_i32_0 = arith.constant 0 : i32
    return %arg0, %c0_i32 : i32, i32
  }
}

</mosaic_0001>

<llo_original>
// kernel: tpu_custom_call.1
$region0: #{tpu_custom_call.1}
  #allocation0 [shape = 'u32[]', space=smem, size = 0x4, offset = 0x4, fixed_abs, tag = 'smem constant byte address 0x4 - core index']
  #allocation1 [shape = 'u32[144,128]{1,0:T(1,128)}', space=vmem, size = 0x12000, scoped, tag = 'internal scratch']
  #allocation2 [shape = 'f32[52,1]{1,0:T(8,128)}', space=vmem, size = 0x7000, scoped, tag = 'scratch operand']
  %s0 = inlined_call_operand.hbm [shape: f32[52,256], index: 0, kind: input, shape index: {}]
  %s1 = inlined_call_operand.hbm [shape: s32[52,1], index: 1, kind: input, shape index: {}]
  %s2 = inlined_call_operand.hbm [shape: f32[8,128], index: 2, kind: output, shape index: {}]
  %s3 = sld [smem:[#allocation0]]
  $region34: #{tpu_custom_call.1} parent=0
    _
  %s5 = ssub.s32 1, %s3
  %s6 = scalar_select 0, %s5, %s3
  $region1: #{tpu_custom_call.1} parent=0
    #allocation3 [shape = 'u8[57344]{0}', space=vmem, size = 0xe000, scoped, tag = 'input window, operand 0, single buffered']
    #allocation4 [shape = 's32[1]{0}', space=sflag, size = 0x4, scoped, tag = 'scoped memory for tpu_custom_call.1']
    #allocation5 [shape = 's32[1]{0}', space=sflag, size = 0x4, scoped, tag = 'scoped memory for tpu_custom_call.1']
    #allocation6 [shape = 'u8[28672]{0}', space=vmem, size = 0x7000, scoped, tag = 'input window, operand 1, single buffered']
    #allocation7 [shape = 's32[1]{0}', space=sflag, size = 0x4, scoped, tag = 'scoped memory for tpu_custom_call.1']
    #allocation8 [shape = 'u8[4096]{0}', space=vmem, size = 0x1000, scoped, tag = 'output window, operand 0, single buffered']
    %7 = vsyncpa [#allocation4], 0
    %8 = vsyncpa [#allocation7], 0
    %9 = vsyncpa [#allocation5], 0
    // Predicated region
    $region2: #{tpu_custom_call.1} parent=1 // pred_check
      _
    $region3: #{tpu_custom_call.1} parent=1 // pred_check_branch
      %11 = sbr.rel (0) target = $region5
    $region4: #{tpu_custom_call.1} parent=1 // pred_region
      %s12 = sadd.s32 0, 0
      %p13 = scmp.lt.s32.totalorder %s12, 0
      %s14 = scalar_select %p13, %s12, 0
      %s15 = smul.u32 7, %s14
      %s17 = ssub.s32 1792, 1792
      %18 = vsyncadd [#allocation4], %s17
      %s19 = smul.addr %s15, 2
      %s20 = smul.addr %s19, 128
      %s21 = scalar_lea.hbm %s0, %s20
      %s22 = sshll.u32 [#allocation3], 4
      %s23 = int_to_ptr.vmem [resolvable:$true] %s22
      %28 = dma.hbm_to_vmem [thread:$0]  %s21, 1792, %s23, [#allocation4], 256, 256, 16
    $region5: #{tpu_custom_call.1} parent=1 // pred_fallthru
      _
    // Predicated region
    $region6: #{tpu_custom_call.1} parent=1 // pred_check
      _
    $region7: #{tpu_custom_call.1} parent=1 // pred_check_branch
      %30 = sbr.rel (0) target = $region9
    $region8: #{tpu_custom_call.1} parent=1 // pred_region
      %s31 = sadd.s32 0, 0
      %p32 = scmp.lt.s32.totalorder %s31, 0
      %s33 = scalar_select %p32, %s31, 0
      %s34 = smul.u32 7, %s33
      %s36 = ssub.s32 896, 896
      %37 = vsyncadd [#allocation7], %s36
      %s38 = smul.addr %s34, 128
      %s39 = scalar_lea.hbm %s1, %s38
      %s40 = sshll.u32 [#allocation6], 4
      %s41 = int_to_ptr.vmem [resolvable:$true] %s40
      %46 = dma.hbm_to_vmem [thread:$0]  %s39, 896, %s41, [#allocation7], 128, 128, 8
    $region9: #{tpu_custom_call.1} parent=1 // pred_fallthru
      _
    // Predicated region
    $region10: #{tpu_custom_call.1} parent=1 // pred_check
      _
    $region11: #{tpu_custom_call.1} parent=1 // pred_check_branch
      %48 = sbr.rel (0) target = $region13
    $region12: #{tpu_custom_call.1} parent=1 // pred_region
      %49 = dma.done [#allocation4], 1792
    $region13: #{tpu_custom_call.1} parent=1 // pred_fallthru
      _
    // Predicated region
    $region14: #{tpu_custom_call.1} parent=1 // pred_check
      _
    $region15: #{tpu_custom_call.1} parent=1 // pred_check_branch
      %51 = sbr.rel (0) target = $region17
    $region16: #{tpu_custom_call.1} parent=1 // pred_region
      %52 = dma.done [#allocation7], 896
    $region17: #{tpu_custom_call.1} parent=1 // pred_fallthru
      _
    %s53 = sadd.s32 0, 0
    %p54 = scmp.lt.s32.totalorder %s53, 0
    %s55 = scalar_select %p54, %s53, 0
    %s56 = smul.u32 7, %s55
    %s57 = sadd.s32 0, 0
    %p58 = scmp.lt.s32.totalorder %s57, 0
    %s59 = scalar_select %p58, %s57, 0
    %s60 = smul.u32 7, %s59
    %p61 = scmp.eq.s32.totalorder 0, 0
    // Predicated region
    $region18: #{tpu_custom_call.1} parent=1 // pred_check
      %p62 = pneg %p61
    $region19: #{tpu_custom_call.1} parent=1 // pred_check_branch
      %64 = sbr.rel (%p62) target = $region21
    $region20: #{tpu_custom_call.1} parent=1 // pred_region
      %vm65 = vcmask 7168
      %66 = vst.msk [vmem:[#allocation2] sm:$0xff] %vm65, 0.0
      %67 = vst.msk [vmem:[#allocation2 + $0x8] sm:$0xff] %vm65, 0.0
      %68 = vst.msk [vmem:[#allocation2 + $0x10] sm:$0xff] %vm65, 0.0
      %69 = vst.msk [vmem:[#allocation2 + $0x18] sm:$0xff] %vm65, 0.0
      %70 = vst.msk [vmem:[#allocation2 + $0x20] sm:$0xff] %vm65, 0.0
      %71 = vst.msk [vmem:[#allocation2 + $0x28] sm:$0xff] %vm65, 0.0
      %vm72 = vcmask 3072
      %73 = vst.msk [vmem:[#allocation2 + $0x30] sm:$0xf] %vm72, 0.0
    $region21: #{tpu_custom_call.1} parent=1 // pred_fallthru
      _
    %v74 = vld [vmem:[#allocation3] sm:$0xff]
    %v75 = vld [vmem:[#allocation3 + $0x8] sm:$0xff]
    %v76 = vld [vmem:[#allocation3 + $0x10] sm:$0xff]
    %v77 = vld [vmem:[#allocation3 + $0x18] sm:$0xff]
    %v78 = vld [vmem:[#allocation3 + $0x20] sm:$0xff]
    %v79 = vld [vmem:[#allocation3 + $0x28] sm:$0xff]
    %v80 = vld [vmem:[#allocation3 + $0x30] sm:$0xff]
    %v81 = vld [vmem:[#allocation3 + $0x38] sm:$0xff]
    %v82 = vld [vmem:[#allocation3 + $0x40] sm:$0xff]
    %v83 = vld [vmem:[#allocation3 + $0x48] sm:$0xff]
    %v84 = vld [vmem:[#allocation3 + $0x50] sm:$0xff]
    %v85 = vld [vmem:[#allocation3 + $0x58] sm:$0xff]
    %v86 = vld [vmem:[#allocation3 + $0x60] sm:$0xf]
    %v87 = vld [vmem:[#allocation3 + $0x68] sm:$0xf]
    %v88 = vld [vmem:[#allocation6] sm:$0xff]
    %v89 = vld [vmem:[#allocation6 + $0x8] sm:$0xff]
    %v90 = vld [vmem:[#allocation6 + $0x10] sm:$0xff]
    %v91 = vld [vmem:[#allocation6 + $0x18] sm:$0xff]
    %v92 = vld [vmem:[#allocation6 + $0x20] sm:$0xff]
    %v93 = vld [vmem:[#allocation6 + $0x28] sm:$0xff]
    %v94 = vld [vmem:[#allocation6 + $0x30] sm:$0xf]
    %v95 = vmax.f32 %v74, %v75
    %96 = vmax.xlane.f32.xlu0 %v95
    %v97 = vpop.xlane.xlu0 %96
    %v98 = vmax.f32 %v76, %v77
    %99 = vmax.xlane.f32.xlu0 %v98
    %v100 = vpop.xlane.xlu0 %99
    %v101 = vmax.f32 %v78, %v79
    %102 = vmax.xlane.f32.xlu0 %v101
    %v103 = vpop.xlane.xlu0 %102
    %v104 = vmax.f32 %v80, %v81
    %105 = vmax.xlane.f32.xlu0 %v104
    %v106 = vpop.xlane.xlu0 %105
    %v107 = vmax.f32 %v82, %v83
    %108 = vmax.xlane.f32.xlu0 %v107
    %v109 = vpop.xlane.xlu0 %108
    %v110 = vmax.f32 %v84, %v85
    %111 = vmax.xlane.f32.xlu0 %v110
    %v112 = vpop.xlane.xlu0 %111
    %vm113 = vcmask 1043456
    %v114 = vsel %vm113, %v86, -inf
    %v115 = vsel %vm113, %v87, -inf
    %v116 = vmax.f32 %v114, %v115
    %117 = vmax.xlane.f32.xlu0 %v116
    %v118 = vpop.xlane.xlu0 %117
    %v119 = vadd.f32 %v74, %v75
    %120 = vadd.xlane.f32.xlu0 %v119
    %v121 = vpop.xlane.xlu0 %120
    %v122 = vadd.f32 %v76, %v77
    %123 = vadd.xlane.f32.xlu0 %v122
    %v124 = vpop.xlane.xlu0 %123
    %v125 = vadd.f32 %v78, %v79
    %126 = vadd.xlane.f32.xlu0 %v125
    %v127 = vpop.xlane.xlu0 %126
    %v128 = vadd.f32 %v80, %v81
    %129 = vadd.xlane.f32.xlu0 %v128
    %v130 = vpop.xlane.xlu0 %129
    %v131 = vadd.f32 %v82, %v83
    %132 = vadd.xlane.f32.xlu0 %v131
    %v133 = vpop.xlane.xlu0 %132
    %v134 = vadd.f32 %v84, %v85
    %135 = vadd.xlane.f32.xlu0 %v134
    %v136 = vpop.xlane.xlu0 %135
    %v137 = vsel %vm113, %v86, 0.0
    %v138 = vsel %vm113, %v87, 0.0
    %v139 = vadd.f32 %v137, %v138
    %140 = vadd.xlane.f32.xlu0 %v139
    %v141 = vpop.xlane.xlu0 %140
    %v142 = vlaneseq
    %v143 = vand.u32 %v142, 127
    %v144 = vadd.s32 %v143, 128
    %145 = vset.pattern.permute.xlu0 0
    %146 = vperm.xlu0 %145, %v88
    %v147 = vpop.permute.xlu0 %146
    %148 = vset.pattern.permute.xlu0 0
    %149 = vperm.xlu0 %148, %v89
    %v150 = vpop.permute.xlu0 %149
    %151 = vset.pattern.permute.xlu0 0
    %152 = vperm.xlu0 %151, %v90
    %v153 = vpop.permute.xlu0 %152
    %154 = vset.pattern.permute.xlu0 0
    %155 = vperm.xlu0 %154, %v91
    %v156 = vpop.permute.xlu0 %155
    %157 = vset.pattern.permute.xlu0 0
    %158 = vperm.xlu0 %157, %v92
    %v159 = vpop.permute.xlu0 %158
    %160 = vset.pattern.permute.xlu0 0
    %161 = vperm.xlu0 %160, %v93
    %v162 = vpop.permute.xlu0 %161
    %163 = vset.pattern.permute.xlu0 0
    %164 = vperm.xlu0 %163, %v94
    %v165 = vpop.permute.xlu0 %164
    %vm166 = vcmp.eq.s32.totalorder %v143, %v147
    %vm167 = vcmp.eq.s32.totalorder %v144, %v147
    %vm168 = vcmp.eq.s32.totalorder %v143, %v150
    %vm169 = vcmp.eq.s32.totalorder %v144, %v150
    %vm170 = vcmp.eq.s32.totalorder %v143, %v153
    %vm171 = vcmp.eq.s32.totalorder %v144, %v153
    %vm172 = vcmp.eq.s32.totalorder %v143, %v156
    %vm173 = vcmp.eq.s32.totalorder %v144, %v156
    %vm174 = vcmp.eq.s32.totalorder %v143, %v159
    %vm175 = vcmp.eq.s32.totalorder %v144, %v159
    %vm176 = vcmp.eq.s32.totalorder %v143, %v162
    %vm177 = vcmp.eq.s32.totalorder %v144, %v162
    %vm178 = vcmp.eq.s32.totalorder %v143, %v165
    %vm179 = vcmp.eq.s32.totalorder %v144, %v165
    %v180 = vsel %vm166, %v74, 0.0
    %v181 = vsel %vm167, %v75, 0.0
    %v182 = vsel %vm168, %v76, 0.0
    %v183 = vsel %vm169, %v77, 0.0
    %v184 = vsel %vm170, %v78, 0.0
    %v185 = vsel %vm171, %v79, 0.0
    %v186 = vsel %vm172, %v80, 0.0
    %v187 = vsel %vm173, %v81, 0.0
    %v188 = vsel %vm174, %v82, 0.0
    %v189 = vsel %vm175, %v83, 0.0
    %v190 = vsel %vm176, %v84, 0.0
    %v191 = vsel %vm177, %v85, 0.0
    %v192 = vsel %vm178, %v86, 0.0
    %v193 = vsel %vm179, %v87, 0.0
    %v194 = vadd.f32 %v180, %v181
    %195 = vadd.xlane.f32.xlu0 %v194
    %v196 = vpop.xlane.xlu0 %195
    %v197 = vadd.f32 %v182, %v183
    %198 = vadd.xlane.f32.xlu0 %v197
    %v199 = vpop.xlane.xlu0 %198
    %v200 = vadd.f32 %v184, %v185
    %201 = vadd.xlane.f32.xlu0 %v200
    %v202 = vpop.xlane.xlu0 %201
    %v203 = vadd.f32 %v186, %v187
    %204 = vadd.xlane.f32.xlu0 %v203
    %v205 = vpop.xlane.xlu0 %204
    %v206 = vadd.f32 %v188, %v189
    %207 = vadd.xlane.f32.xlu0 %v206
    %v208 = vpop.xlane.xlu0 %207
    %v209 = vadd.f32 %v190, %v191
    %210 = vadd.xlane.f32.xlu0 %v209
    %v211 = vpop.xlane.xlu0 %210
    %v212 = vsel %vm113, %v192, 0.0
    %v213 = vsel %vm113, %v193, 0.0
    %v214 = vadd.f32 %v212, %v213
    %215 = vadd.xlane.f32.xlu0 %v214
    %v216 = vpop.xlane.xlu0 %215
    %v217 = vsub.f32 %v74, %v97
    %v218 = vsub.f32 %v75, %v97
    %v219 = vsub.f32 %v76, %v100
    %v220 = vsub.f32 %v77, %v100
    %v221 = vsub.f32 %v78, %v103
    %v222 = vsub.f32 %v79, %v103
    %v223 = vsub.f32 %v80, %v106
    %v224 = vsub.f32 %v81, %v106
    %v225 = vsub.f32 %v82, %v109
    %v226 = vsub.f32 %v83, %v109
    %v227 = vsub.f32 %v84, %v112
    %v228 = vsub.f32 %v85, %v112
    %v229 = vsub.f32 %v86, %v118
    %v230 = vsub.f32 %v87, %v118
    %v231 = vmul.f32 %v217, 1.442695
    %v232 = vpow.pop %v231
    %v233 = vmul.f32 %v218, 1.442695
    %v234 = vpow.pop %v233
    %v235 = vmul.f32 %v219, 1.442695
    %v236 = vpow.pop %v235
    %v237 = vmul.f32 %v220, 1.442695
    %v238 = vpow.pop %v237
    %v239 = vmul.f32 %v221, 1.442695
    %v240 = vpow.pop %v239
    %v241 = vmul.f32 %v222, 1.442695
    %v242 = vpow.pop %v241
    %v243 = vmul.f32 %v223, 1.442695
    %v244 = vpow.pop %v243
    %v245 = vmul.f32 %v224, 1.442695
    %v246 = vpow.pop %v245
    %v247 = vmul.f32 %v225, 1.442695
    %v248 = vpow.pop %v247
    %v249 = vmul.f32 %v226, 1.442695
    %v250 = vpow.pop %v249
    %v251 = vmul.f32 %v227, 1.442695
    %v252 = vpow.pop %v251
    %v253 = vmul.f32 %v228, 1.442695
    %v254 = vpow.pop %v253
    %v255 = vmul.f32 %v229, 1.442695
    %v256 = vpow.pop %v255
    %v257 = vmul.f32 %v230, 1.442695
    %v258 = vpow.pop %v257
    %v259 = vadd.f32 %v232, %v234
    %260 = vadd.xlane.f32.xlu0 %v259
    %v261 = vpop.xlane.xlu0 %260
    %v262 = vadd.f32 %v236, %v238
    %263 = vadd.xlane.f32.xlu0 %v262
    %v264 = vpop.xlane.xlu0 %263
    %v265 = vadd.f32 %v240, %v242
    %266 = vadd.xlane.f32.xlu0 %v265
    %v267 = vpop.xlane.xlu0 %266
    %v268 = vadd.f32 %v244, %v246
    %269 = vadd.xlane.f32.xlu0 %v268
    %v270 = vpop.xlane.xlu0 %269
    %v271 = vadd.f32 %v248, %v250
    %272 = vadd.xlane.f32.xlu0 %v271
    %v273 = vpop.xlane.xlu0 %272
    %v274 = vadd.f32 %v252, %v254
    %275 = vadd.xlane.f32.xlu0 %v274
    %v276 = vpop.xlane.xlu0 %275
    %v277 = vsel %vm113, %v256, 0.0
    %v278 = vsel %vm113, %v258, 0.0
    %v279 = vadd.f32 %v277, %v278
    %280 = vadd.xlane.f32.xlu0 %v279
    %v281 = vpop.xlane.xlu0 %280
    %v282 = vlog2.pop %v261
    %v283 = vmul.f32 %v282, 0.6931472
    %v284 = vlog2.pop %v264
    %v285 = vmul.f32 %v284, 0.6931472
    %v286 = vlog2.pop %v267
    %v287 = vmul.f32 %v286, 0.6931472
    %v288 = vlog2.pop %v270
    %v289 = vmul.f32 %v288, 0.6931472
    %v290 = vlog2.pop %v273
    %v291 = vmul.f32 %v290, 0.6931472
    %v292 = vlog2.pop %v276
    %v293 = vmul.f32 %v292, 0.6931472
    %v294 = vlog2.pop %v281
    %v295 = vmul.f32 %v294, 0.6931472
    %v296 = vadd.f32 %v97, %v283
    %v297 = vadd.f32 %v100, %v285
    %v298 = vadd.f32 %v103, %v287
    %v299 = vadd.f32 %v106, %v289
    %v300 = vadd.f32 %v109, %v291
    %v301 = vadd.f32 %v112, %v293
    %v302 = vadd.f32 %v118, %v295
    %v303 = vmul.f32 %v196, 0.89960784
    %v304 = vmul.f32 %v199, 0.89960784
    %v305 = vmul.f32 %v202, 0.89960784
    %v306 = vmul.f32 %v205, 0.89960784
    %v307 = vmul.f32 %v208, 0.89960784
    %v308 = vmul.f32 %v211, 0.89960784
    %v309 = vmul.f32 %v216, 0.89960784
    %v310 = vsub.f32 %v296, %v303
    %v311 = vsub.f32 %v297, %v304
    %v312 = vsub.f32 %v298, %v305
    %v313 = vsub.f32 %v299, %v306
    %v314 = vsub.f32 %v300, %v307
    %v315 = vsub.f32 %v301, %v308
    %v316 = vsub.f32 %v302, %v309
    %v317 = vmul.f32 %v121, 0.00039215686
    %v318 = vmul.f32 %v124, 0.00039215686
    %v319 = vmul.f32 %v127, 0.00039215686
    %v320 = vmul.f32 %v130, 0.00039215686
    %v321 = vmul.f32 %v133, 0.00039215686
    %v322 = vmul.f32 %v136, 0.00039215686
    %v323 = vmul.f32 %v141, 0.00039215686
    %v324 = vsub.f32 %v310, %v317
    %v325 = vsub.f32 %v311, %v318
    %v326 = vsub.f32 %v312, %v319
    %v327 = vsub.f32 %v313, %v320
    %v328 = vsub.f32 %v314, %v321
    %v329 = vsub.f32 %v315, %v322
    %v330 = vsub.f32 %v316, %v323
    %v331 = vld [vmem:[#allocation2] sm:$0xff]
    %v332 = vld [vmem:[#allocation2 + $0x8] sm:$0xff]
    %v333 = vld [vmem:[#allocation2 + $0x10] sm:$0xff]
    %v334 = vld [vmem:[#allocation2 + $0x18] sm:$0xff]
    %v335 = vld [vmem:[#allocation2 + $0x20] sm:$0xff]
    %v336 = vld [vmem:[#allocation2 + $0x28] sm:$0xff]
    %v337 = vld [vmem:[#allocation2 + $0x30] sm:$0xf]
    %v338 = vadd.f32 %v331, %v324
    %v339 = vadd.f32 %v332, %v325
    %v340 = vadd.f32 %v333, %v326
    %v341 = vadd.f32 %v334, %v327
    %v342 = vadd.f32 %v335, %v328
    %v343 = vadd.f32 %v336, %v329
    %v344 = vadd.f32 %v337, %v330
    %vm345 = vcmask 7168
    %346 = vst.msk [vmem:[#allocation2] sm:$0xff] %vm345, %v338
    %347 = vst.msk [vmem:[#allocation2 + $0x8] sm:$0xff] %vm345, %v339
    %348 = vst.msk [vmem:[#allocation2 + $0x10] sm:$0xff] %vm345, %v340
    %349 = vst.msk [vmem:[#allocation2 + $0x18] sm:$0xff] %vm345, %v341
    %350 = vst.msk [vmem:[#allocation2 + $0x20] sm:$0xff] %vm345, %v342
    %351 = vst.msk [vmem:[#allocation2 + $0x28] sm:$0xff] %vm345, %v343
    %vm352 = vcmask 3072
    %353 = vst.msk [vmem:[#allocation2 + $0x30] sm:$0xf] %vm352, %v344
    // Predicated region
    $region22: #{tpu_custom_call.1} parent=1 // pred_check
      %p354 = pneg %p61
    $region23: #{tpu_custom_call.1} parent=1 // pred_check_branch
      %356 = sbr.rel (%p354) target = $region25
    $region24: #{tpu_custom_call.1} parent=1 // pred_region
      %v357 = vld [vmem:[#allocation2] sm:$0xff]
      %v358 = vld [vmem:[#allocation2 + $0x8] sm:$0xff]
      %v359 = vld [vmem:[#allocation2 + $0x10] sm:$0xff]
      %v360 = vld [vmem:[#allocation2 + $0x18] sm:$0xff]
      %v361 = vld [vmem:[#allocation2 + $0x20] sm:$0xff]
      %v362 = vld [vmem:[#allocation2 + $0x28] sm:$0xff]
      %v363 = vld [vmem:[#allocation2 + $0x30] sm:$0xf]
      %v364 = vsel %vm345, %v357, 0.0
      %v365 = vsel %vm345, %v358, 0.0
      %v366 = vadd.f32 %v364, %v365
      %v367 = vsel %vm345, %v359, 0.0
      %v368 = vadd.f32 %v366, %v367
      %v369 = vsel %vm345, %v360, 0.0
      %v370 = vadd.f32 %v368, %v369
      %v371 = vsel %vm345, %v361, 0.0
      %v372 = vadd.f32 %v370, %v371
      %v373 = vsel %vm345, %v362, 0.0
      %v374 = vadd.f32 %v372, %v373
      %v375 = vsel %vm352, %v363, 0.0
      %v376 = vadd.f32 %v374, %v375
      %377 = vadd.xlane.f32.xlu0 %v376
      %v378 = vpop.xlane.xlu0 %377
      %v379 = vrot.slane %v378, 4
      %v380 = vadd.f32 %v378, %v379
      %v381 = vrot.slane %v380, 2
      %v382 = vadd.f32 %v380, %v381
      %v383 = vrot.slane %v382, 1
      %v384 = vadd.f32 %v382, %v383
      %s385 = vtos %v384
      %v386 = vstv %s385
      %v387 = vadd.f32 %v386, 0.0
      %388 = vst [vmem:[#allocation8] sm:$0xff] %v387
    $region25: #{tpu_custom_call.1} parent=1 // pred_fallthru
      _
    // Predicated region
    $region26: #{tpu_custom_call.1} parent=1 // pred_check
      _
    $region27: #{tpu_custom_call.1} parent=1 // pred_check_branch
      %390 = sbr.rel (0) target = $region29
    $region28: #{tpu_custom_call.1} parent=1 // pred_region
      %s392 = ssub.s32 128, 128
      %393 = vsyncadd [#allocation5], %s392
      %s395 = sshll.u32 [#allocation8], 4
      %s396 = int_to_ptr.vmem [resolvable:$true] %s395
      %398 = dma.vmem_to_hbm [thread:$0]  %s396, 128, %s2, [#allocation5]
    $region29: #{tpu_custom_call.1} parent=1 // pred_fallthru
      _
    // Predicated region
    $region30: #{tpu_custom_call.1} parent=1 // pred_check
      _
    $region31: #{tpu_custom_call.1} parent=1 // pred_check_branch
      %400 = sbr.rel (0) target = $region33
    $region32: #{tpu_custom_call.1} parent=1 // pred_region
      %401 = dma.done [#allocation5], 128
    $region33: #{tpu_custom_call.1} parent=1 // pred_fallthru
      _
    %402 = vsyncpa [#allocation4], 1
    %403 = vsyncpa [#allocation7], 1
    %404 = vsyncpa [#allocation5], 1

</llo_original>
